<compile_context>
chip_gen: v6e
topology: v6e:2x2x1
jax: 0.10.0
libtpu: 0.0.40
codegen_flags: <defaults>
</compile_context>

<pallas_src>
import functools

import jax
import jax.numpy as jnp
from jax.experimental import pallas as pl
from jax.experimental.pallas import tpu as pltpu

_LANE = 128
_BATCH_ALIGN = 16          # bf16 sublane packing
_NEG_BIG = -1e30


def _round_up(n, m):
    return ((n + m - 1) // m) * m


def _cdiv(a, b):
    return -(-a // b)


# ----------------------------- Pallas kernel -------------------------------

def _mlp_kernel(x_ref, *refs, num_layers, neg_slope):
    """Fused MLP forward for one batch tile.

    refs = (w0, b0, w1, b1, ..., w_{L-1}, b_{L-1}, o_ref)
      x    : [BT, D0p]          bf16 activations (zero-padded features)
      w_i  : [D_ip, D_{i+1}p]   bf16, pre-transposed, zero-padded
      b_i  : [1,   D_{i+1}p]    f32  (last layer: padded class lanes hold -1e30)
      o    : [BT, Cp]           f32 log-probs
    """
    o_ref = refs[-1]
    h = x_ref[...]                                            # bf16
    for i in range(num_layers):
        w = refs[2 * i][...]
        b = refs[2 * i + 1][...]
        # bf16 MXU inputs, f32 accumulation; elementwise math stays f32 (v5e-safe).
        z = jnp.dot(h, w, preferred_element_type=jnp.float32) + b
        if i < num_layers - 1:
            # LeakyReLU in f32, carried to the next layer as bf16 (MXU input dtype).
            h = jnp.where(z >= 0, z, neg_slope * z).astype(jnp.bfloat16)
        else:
            # Padded class lanes carry the baked -1e30 bias (zero weight columns),
            # so max/sum reductions ignore them without an explicit mask.
            m = jnp.max(z, axis=1, keepdims=True)
            shifted = z - m
            lse = jnp.log(jnp.sum(jnp.exp(shifted), axis=1, keepdims=True))
            o_ref[...] = (shifted - lse).astype(o_ref.dtype)


# ------------------------------ JAX wrapper ---------------------------------

class MLPPallas:
    """Mirrors the PyTorch MLP: (Linear -> LeakyReLU)*, Linear, log_softmax."""

    def __init__(self, n_inputs, n_hidden, n_classes, neg_slope, key):
        n_in, n_out = [], []
        for i in range(len(n_hidden) + 1):
            n_in.append(n_inputs if i == 0 else n_hidden[i - 1])
            n_out.append(n_classes if i == len(n_hidden) else n_hidden[i])
        self.neg_slope = float(neg_slope)
        self.n_inputs = n_inputs
        self.n_classes = n_classes

        num_layers = len(n_in)
        # Init matches torch.nn.Linear defaults; keep an f32 copy for reference math,
        # and a padded / pre-transposed / bf16 copy that the kernel consumes.
        self.params_f32 = []   # (w [Dout, Din] f32, b [Dout] f32) -- reference only
        self.params = []       # (w_t [Din_p, Dout_p] bf16, b [1, Dout_p] f32) -- kernel
        widths = []
        for layer, (fan_in, fan_out) in enumerate(zip(n_in, n_out)):
            key, wk, bk = jax.random.split(key, 3)
            bound = 1.0 / (fan_in ** 0.5)
            w = jax.random.uniform(wk, (fan_out, fan_in), jnp.float32, -bound, bound)
            b = jax.random.uniform(bk, (fan_out,), jnp.float32, -bound, bound)
            self.params_f32.append((w, b))

            din_p = _round_up(fan_in, _LANE)
            dout_p = _round_up(fan_out, _LANE)
            widths += [din_p, dout_p]
            w_t = jnp.zeros((din_p, dout_p), jnp.float32).at[:fan_in, :fan_out].set(w.T)
            is_last = layer == num_layers - 1
            # Last layer: padded class lanes get a huge negative bias so that the
            # in-kernel log_softmax reductions ignore them (weight columns are zero).
            fill = _NEG_BIG if is_last else 0.0
            b_p = jnp.full((1, dout_p), fill, jnp.float32).at[:, :fan_out].set(b)
            self.params.append((w_t.astype(jnp.bfloat16), b_p))

        self._din_pad = _round_up(n_inputs, _LANE)
        self._c_pad = _round_up(n_classes, _LANE)
        self._max_width_pad = max(widths)
        self._weight_bytes = sum(w.size * w.dtype.itemsize + b.size * b.dtype.itemsize
                                 for w, b in self.params)
        # TODO(synk): when padded bf16 weights exceed ~48 MiB (v7x has only 64 MiB
        # VMEM/TC), fall back to K-dim (reduction-axis) tiling with an f32 accumulator
        # scratch instead of keeping the whole network resident.
        self._forward = jax.jit(self._apply)   # jit once; params are baked-in constants

    # -- tiling / budget helpers ------------------------------------------------

    @staticmethod
    def _choose_batch_tiling(batch):
        """Pick (batch_tile, padded_batch): minimal padding, MXU-sized tiles,
        and >=2 grid blocks once the batch is large enough (v7x megacore)."""
        b_rounded = _round_up(batch, _BATCH_ALIGN)
        if b_rounded <= 256:
            n_blocks = 1
        else:
            n_blocks = max(2, _cdiv(b_rounded, 512))
        bt = _round_up(_cdiv(b_rounded, n_blocks), _BATCH_ALIGN)
        return bt, n_blocks * bt

    def _vmem_limit_bytes(self, bt):
        weight_bytes = self._weight_bytes                  # single-buffered residents
        x_bytes = bt * self._din_pad * 2 * 2               # bf16 input tile, double-buffered
        out_bytes = bt * self._c_pad * 4 * 2               # f32 output tile, double-buffered
        act_bytes = bt * self._max_width_pad * (4 + 2)     # f32 z + bf16 h intermediates
        need = weight_bytes + x_bytes + out_bytes + act_bytes
        limit = int(1.25 * need) + (8 << 20)               # 25% + 8 MiB headroom
        return int(min(max(limit, 32 << 20), 100 << 20))

    # -- forward ------------------------------------------------------------------

    def _apply(self, x):
        batch = x.shape[0]
        bt, b_full = self._choose_batch_tiling(batch)

        x_pad = jnp.zeros((b_full, self._din_pad), jnp.bfloat16)
        x_pad = x_pad.at[:batch, :self.n_inputs].set(x.astype(jnp.bfloat16))

        operands = [x_pad]
        in_specs = [pl.BlockSpec((bt, self._din_pad), lambda i: (i, 0))]
        for w, b in self.params:
            # Grid-invariant (resident) operands: single-buffer to halve VMEM footprint.
            in_specs.append(pl.BlockSpec(w.shape, lambda i: (0, 0),
                                         pipeline_mode=pl.Buffered(1)))
            in_specs.append(pl.BlockSpec(b.shape, lambda i: (0, 0),
                                         pipeline_mode=pl.Buffered(1)))
            operands += [w, b]

        kern = functools.partial(
            _mlp_kernel,
            num_layers=len(self.params),
            neg_slope=self.neg_slope,
        )

        out_pad = pl.pallas_call(
            kern,
            out_shape=jax.ShapeDtypeStruct((b_full, self._c_pad), jnp.float32),
            grid=(b_full // bt,),
            in_specs=in_specs,
            out_specs=pl.BlockSpec((bt, self._c_pad), lambda i: (i, 0)),
            compiler_params=pltpu.CompilerParams(
                dimension_semantics=("parallel",),
                vmem_limit_bytes=self._vmem_limit_bytes(bt)),
        )(*operands)

        return out_pad[:batch, :self.n_classes]

    def __call__(self, x):
        return self._forward(x)


# ---------------------------- plain-JAX reference ----------------------------

def _reference_forward(params_f32, x, neg_slope):
    h = x
    for w, b in params_f32[:-1]:
        h = h @ w.T + b
        h = jnp.where(h >= 0, h, neg_slope * h)
    w, b = params_f32[-1]
    logits = h @ w.T + b
    return jax.nn.log_softmax(logits, axis=1)


# ---------------------------------- main -------------------------------------

if __name__ == "__main__":
    key = jax.random.PRNGKey(0)
    key, xkey, pkey = jax.random.split(key, 3)

    batch = 8
    n_inputs = 32
    n_hidden = [64, 32]
    n_classes = 10
    neg_slope = 0.02

    x = jax.random.normal(xkey, (batch, n_inputs), jnp.float32)

    model = MLPPallas(n_inputs, n_hidden, n_classes, neg_slope, pkey)
    out = jax.block_until_ready(model(x))

    # sanity: shape, rows sum (in prob space) to ~1, and agreement with f32 reference
    # (tolerance covers the bf16 MXU inputs; accumulation is f32).
    assert out.shape == (batch, n_classes)
    probs_sum = jnp.sum(jnp.exp(out), axis=1)
    assert bool(jnp.all(jnp.abs(probs_sum - 1.0) < 1e-4))

    ref = _reference_forward(model.params_f32, x, neg_slope)
    assert bool(jnp.max(jnp.abs(out - ref)) < 5e-2)

    print("KERNEL_OK")
</pallas_src>

<mosaic_0001>
module attributes {stable_mosaic.version = 11 : i64} {
  func.func @_mlp_kernel(%arg0: i32, %arg1: memref<16x128xbf16, #tpu.memory_space<vmem>>, %arg2: memref<128x128xbf16, #tpu.memory_space<vmem>>, %arg3: memref<1x128xf32, #tpu.memory_space<vmem>>, %arg4: memref<128x128xbf16, #tpu.memory_space<vmem>>, %arg5: memref<1x128xf32, #tpu.memory_space<vmem>>, %arg6: memref<128x128xbf16, #tpu.memory_space<vmem>>, %arg7: memref<1x128xf32, #tpu.memory_space<vmem>>, %arg8: memref<16x128xf32, #tpu.memory_space<vmem>>) attributes {dimension_semantics = [#tpu.dimension_semantics<parallel>], iteration_bounds = array<i64: 1>, scalar_prefetch = 0 : i64, scratch_operands = 0 : i64, tpu.core_type = #tpu.core_type<tc>, window_params = [{transform_indices = @transform_0, window_bounds = array<i64: 16, 128>}, {pipeline_mode = #tpu.pipeline_mode<synchronous>, transform_indices = @transform_1, window_bounds = array<i64: 128, 128>}, {pipeline_mode = #tpu.pipeline_mode<synchronous>, transform_indices = @transform_2, window_bounds = array<i64: 1, 128>}, {pipeline_mode = #tpu.pipeline_mode<synchronous>, transform_indices = @transform_3, window_bounds = array<i64: 128, 128>}, {pipeline_mode = #tpu.pipeline_mode<synchronous>, transform_indices = @transform_4, window_bounds = array<i64: 1, 128>}, {pipeline_mode = #tpu.pipeline_mode<synchronous>, transform_indices = @transform_5, window_bounds = array<i64: 128, 128>}, {pipeline_mode = #tpu.pipeline_mode<synchronous>, transform_indices = @transform_6, window_bounds = array<i64: 1, 128>}, {transform_indices = @transform_7, window_bounds = array<i64: 16, 128>}]} {
    %c0 = arith.constant 0 : index
    %c0_0 = arith.constant 0 : index
    %0 = vector.load %arg1[%c0, %c0_0] : memref<16x128xbf16, #tpu.memory_space<vmem>>, vector<16x128xbf16>
    %c0_1 = arith.constant 0 : index
    %c0_2 = arith.constant 0 : index
    %1 = vector.load %arg2[%c0_1, %c0_2] : memref<128x128xbf16, #tpu.memory_space<vmem>>, vector<128x128xbf16>
    %c0_3 = arith.constant 0 : index
    %c0_4 = arith.constant 0 : index
    %2 = vector.load %arg3[%c0_3, %c0_4] : memref<1x128xf32, #tpu.memory_space<vmem>>, vector<1x128xf32>
    %cst = arith.constant dense<0.000000e+00> : vector<16x128xf32>
    %3 = tpu.matmul %0, %1, %cst {dimension_numbers = #tpu.dot_dimension_numbers<[1], [0], [0], [1], [0, 0, 1, 1], [], []>} : vector<16x128xbf16>, vector<128x128xbf16>, vector<16x128xf32> -> vector<16x128xf32>
    %4 = vector.broadcast %2 : vector<1x128xf32> to vector<16x128xf32>
    %5 = arith.addf %3, %4 : vector<16x128xf32>
    %cst_5 = arith.constant 0.000000e+00 : f32
    %6 = vector.broadcast %cst_5 : f32 to vector<16x128xf32>
    %7 = arith.cmpf oge, %5, %6 : vector<16x128xf32>
    %cst_6 = arith.constant 2.000000e-02 : f32
    %8 = vector.broadcast %cst_6 : f32 to vector<16x128xf32>
    %9 = arith.mulf %8, %5 : vector<16x128xf32>
    %10 = arith.select %7, %5, %9 : vector<16x128xi1>, vector<16x128xf32>
    %11 = arith.truncf %10 : vector<16x128xf32> to vector<16x128xbf16>
    %c0_7 = arith.constant 0 : index
    %c0_8 = arith.constant 0 : index
    %12 = vector.load %arg4[%c0_7, %c0_8] : memref<128x128xbf16, #tpu.memory_space<vmem>>, vector<128x128xbf16>
    %c0_9 = arith.constant 0 : index
    %c0_10 = arith.constant 0 : index
    %13 = vector.load %arg5[%c0_9, %c0_10] : memref<1x128xf32, #tpu.memory_space<vmem>>, vector<1x128xf32>
    %cst_11 = arith.constant dense<0.000000e+00> : vector<16x128xf32>
    %14 = tpu.matmul %11, %12, %cst_11 {dimension_numbers = #tpu.dot_dimension_numbers<[1], [0], [0], [1], [0, 0, 1, 1], [], []>} : vector<16x128xbf16>, vector<128x128xbf16>, vector<16x128xf32> -> vector<16x128xf32>
    %15 = vector.broadcast %13 : vector<1x128xf32> to vector<16x128xf32>
    %16 = arith.addf %14, %15 : vector<16x128xf32>
    %cst_12 = arith.constant 0.000000e+00 : f32
    %17 = vector.broadcast %cst_12 : f32 to vector<16x128xf32>
    %18 = arith.cmpf oge, %16, %17 : vector<16x128xf32>
    %cst_13 = arith.constant 2.000000e-02 : f32
    %19 = vector.broadcast %cst_13 : f32 to vector<16x128xf32>
    %20 = arith.mulf %19, %16 : vector<16x128xf32>
    %21 = arith.select %18, %16, %20 : vector<16x128xi1>, vector<16x128xf32>
    %22 = arith.truncf %21 : vector<16x128xf32> to vector<16x128xbf16>
    %c0_14 = arith.constant 0 : index
    %c0_15 = arith.constant 0 : index
    %23 = vector.load %arg6[%c0_14, %c0_15] : memref<128x128xbf16, #tpu.memory_space<vmem>>, vector<128x128xbf16>
    %c0_16 = arith.constant 0 : index
    %c0_17 = arith.constant 0 : index
    %24 = vector.load %arg7[%c0_16, %c0_17] : memref<1x128xf32, #tpu.memory_space<vmem>>, vector<1x128xf32>
    %cst_18 = arith.constant dense<0.000000e+00> : vector<16x128xf32>
    %25 = tpu.matmul %22, %23, %cst_18 {dimension_numbers = #tpu.dot_dimension_numbers<[1], [0], [0], [1], [0, 0, 1, 1], [], []>} : vector<16x128xbf16>, vector<128x128xbf16>, vector<16x128xf32> -> vector<16x128xf32>
    %26 = vector.broadcast %24 : vector<1x128xf32> to vector<16x128xf32>
    %27 = arith.addf %25, %26 : vector<16x128xf32>
    %cst_19 = arith.constant dense<0xFF800000> : vector<16xf32>
    %28 = vector.multi_reduction <maximumf>, %27, %cst_19 [1] : vector<16x128xf32> to vector<16xf32>
    %29 = vector.shape_cast %28 : vector<16xf32> to vector<16x1xf32>
    %30 = vector.broadcast %29 : vector<16x1xf32> to vector<16x128xf32>
    %31 = arith.subf %27, %30 : vector<16x128xf32>
    %32 = math.exp %31 : vector<16x128xf32>
    %cst_20 = arith.constant dense<0.000000e+00> : vector<16xf32>
    %33 = vector.multi_reduction <add>, %32, %cst_20 [1] : vector<16x128xf32> to vector<16xf32>
    %34 = vector.shape_cast %33 : vector<16xf32> to vector<16x1xf32>
    %35 = math.log %34 : vector<16x1xf32>
    %36 = vector.broadcast %35 : vector<16x1xf32> to vector<16x128xf32>
    %37 = arith.subf %31, %36 : vector<16x128xf32>
    %c0_21 = arith.constant 0 : index
    %c0_22 = arith.constant 0 : index
    %38 = vector.load %arg8[%c0_21, %c0_22] : memref<16x128xf32, #tpu.memory_space<vmem>>, vector<16x128xf32>
    tpu.vector_store %arg8[%c0_21, %c0_22], %37 {strides = array<i32>} : memref<16x128xf32, #tpu.memory_space<vmem>>, vector<16x128xf32>,
    return
  }
  func.func @transform_0(%arg0: i32) -> (i32, i32) {
    %c0_i32 = arith.constant 0 : i32
    %c0_i32_0 = arith.constant 0 : i32
    return %arg0, %c0_i32 : i32, i32
  }
  func.func @transform_1(%arg0: i32) -> (i32, i32) {
    %c0_i32 = arith.constant 0 : i32
    %c0_i32_0 = arith.constant 0 : i32
    %c0_i32_1 = arith.constant 0 : i32
    return %c0_i32, %c0_i32_0 : i32, i32
  }
  func.func @transform_2(%arg0: i32) -> (i32, i32) {
    %c0_i32 = arith.constant 0 : i32
    %c0_i32_0 = arith.constant 0 : i32
    %c0_i32_1 = arith.constant 0 : i32
    return %c0_i32, %c0_i32_0 : i32, i32
  }
  func.func @transform_3(%arg0: i32) -> (i32, i32) {
    %c0_i32 = arith.constant 0 : i32
    %c0_i32_0 = arith.constant 0 : i32
    %c0_i32_1 = arith.constant 0 : i32
    return %c0_i32, %c0_i32_0 : i32, i32
  }
  func.func @transform_4(%arg0: i32) -> (i32, i32) {
    %c0_i32 = arith.constant 0 : i32
    %c0_i32_0 = arith.constant 0 : i32
    %c0_i32_1 = arith.constant 0 : i32
    return %c0_i32, %c0_i32_0 : i32, i32
  }
  func.func @transform_5(%arg0: i32) -> (i32, i32) {
    %c0_i32 = arith.constant 0 : i32
    %c0_i32_0 = arith.constant 0 : i32
    %c0_i32_1 = arith.constant 0 : i32
    return %c0_i32, %c0_i32_0 : i32, i32
  }
  func.func @transform_6(%arg0: i32) -> (i32, i32) {
    %c0_i32 = arith.constant 0 : i32
    %c0_i32_0 = arith.constant 0 : i32
    %c0_i32_1 = arith.constant 0 : i32
    return %c0_i32, %c0_i32_0 : i32, i32
  }
  func.func @transform_7(%arg0: i32) -> (i32, i32) {
    %c0_i32 = arith.constant 0 : i32
    %c0_i32_0 = arith.constant 0 : i32
    return %arg0, %c0_i32 : i32, i32
  }
}

</mosaic_0001>

<llo_original>
// kernel: _apply.1
$region0: #{_apply.1}
  #allocation0 [shape = 'u32[]', space=smem, size = 0x4, offset = 0x4, fixed_abs, tag = 'smem constant byte address 0x4 - core index']
  #allocation1 [shape = 'u32[144,128]{1,0:T(1,128)}', space=vmem, size = 0x12000, scoped, tag = 'internal scratch']
  %s0 = inlined_call_operand.vmem [shape: bf16[16,128], index: 0, kind: input, shape index: {}]
  %s1 = inlined_call_operand.hbm [shape: bf16[128,128], index: 1, kind: input, shape index: {}]
  %s2 = inlined_call_operand.vmem [shape: f32[1,128], index: 2, kind: input, shape index: {}]
  %s3 = inlined_call_operand.hbm [shape: bf16[128,128], index: 3, kind: input, shape index: {}]
  %s4 = inlined_call_operand.vmem [shape: f32[1,128], index: 4, kind: input, shape index: {}]
  %s5 = inlined_call_operand.hbm [shape: bf16[128,128], index: 5, kind: input, shape index: {}]
  %s6 = inlined_call_operand.vmem [shape: f32[1,128], index: 6, kind: input, shape index: {}]
  %s7 = inlined_call_operand.vmem [shape: f32[16,128], index: 7, kind: output, shape index: {}]
  %s8 = sld [smem:[#allocation0]]
  $region50: #{_apply.1} parent=0
    _
  %s10 = ssub.s32 1, %s8
  %s11 = scalar_select 0, %s10, %s8
  $region1: #{_apply.1} parent=0
    #allocation2 [shape = 'u8[32768]{0}', space=vmem, size = 0x8000, scoped, tag = 'input window, operand 1, single buffered']
    #allocation3 [shape = 's32[1]{0}', space=sflag, size = 0x4, scoped, tag = 'scoped memory for _apply.1']
    #allocation4 [shape = 'u8[32768]{0}', space=vmem, size = 0x8000, scoped, tag = 'input window, operand 3, single buffered']
    #allocation5 [shape = 's32[1]{0}', space=sflag, size = 0x4, scoped, tag = 'scoped memory for _apply.1']
    #allocation6 [shape = 'u8[32768]{0}', space=vmem, size = 0x8000, scoped, tag = 'input window, operand 5, single buffered']
    %12 = vsyncpa [#allocation3], 0
    %13 = vsyncpa [#allocation5], 0
    // Predicated region
    $region2: #{_apply.1} parent=1 // pred_check
      _
    $region3: #{_apply.1} parent=1 // pred_check_branch
      %15 = sbr.rel (0) target = $region5
    $region4: #{_apply.1} parent=1 // pred_region
      _
    $region5: #{_apply.1} parent=1 // pred_fallthru
      _
    // Predicated region
    $region6: #{_apply.1} parent=1 // pred_check
      _
    $region7: #{_apply.1} parent=1 // pred_check_branch
      %17 = sbr.rel (0) target = $region9
    $region8: #{_apply.1} parent=1 // pred_region
      %s19 = ssub.s32 1024, 1024
      %20 = vsyncadd [#allocation3], %s19
      %s21 = sshll.u32 [#allocation2], 4
      %s22 = int_to_ptr.vmem [resolvable:$true] %s21
      %27 = dma.hbm_to_vmem [thread:$0]  %s1, 1024, %s22, [#allocation3], 64, 64, 4
    $region9: #{_apply.1} parent=1 // pred_fallthru
      _
    // Predicated region
    $region10: #{_apply.1} parent=1 // pred_check
      _
    $region11: #{_apply.1} parent=1 // pred_check_branch
      %29 = sbr.rel (0) target = $region13
    $region12: #{_apply.1} parent=1 // pred_region
      _
    $region13: #{_apply.1} parent=1 // pred_fallthru
      _
    // Predicated region
    $region14: #{_apply.1} parent=1 // pred_check
      _
    $region15: #{_apply.1} parent=1 // pred_check_branch
      %31 = sbr.rel (0) target = $region17
    $region16: #{_apply.1} parent=1 // pred_region
      %s33 = ssub.s32 1024, 1024
      %34 = vsyncadd [#allocation5], %s33
      %s35 = sshll.u32 [#allocation4], 4
      %s36 = int_to_ptr.vmem [resolvable:$true] %s35
      %41 = dma.hbm_to_vmem [thread:$0]  %s3, 1024, %s36, [#allocation5], 64, 64, 4
    $region17: #{_apply.1} parent=1 // pred_fallthru
      _
    // Predicated region
    $region18: #{_apply.1} parent=1 // pred_check
      _
    $region19: #{_apply.1} parent=1 // pred_check_branch
      %43 = sbr.rel (0) target = $region21
    $region20: #{_apply.1} parent=1 // pred_region
      _
    $region21: #{_apply.1} parent=1 // pred_fallthru
      _
    // Predicated region
    $region22: #{_apply.1} parent=1 // pred_check
      _
    $region23: #{_apply.1} parent=1 // pred_check_branch
      %45 = sbr.rel (0) target = $region25
    $region24: #{_apply.1} parent=1 // pred_region
      %s47 = ssub.s32 1024, 1024
      %48 = vsyncadd [#allocation5], %s47
      %s49 = sshll.u32 [#allocation6], 4
      %s50 = int_to_ptr.vmem [resolvable:$true] %s49
      %55 = dma.hbm_to_vmem [thread:$0]  %s5, 1024, %s50, [#allocation5], 64, 64, 4
    $region25: #{_apply.1} parent=1 // pred_fallthru
      _
    // Predicated region
    $region26: #{_apply.1} parent=1 // pred_check
      _
    $region27: #{_apply.1} parent=1 // pred_check_branch
      %57 = sbr.rel (0) target = $region29
    $region28: #{_apply.1} parent=1 // pred_region
      _
    $region29: #{_apply.1} parent=1 // pred_fallthru
      _
    // Predicated region
    $region30: #{_apply.1} parent=1 // pred_check
      _
    $region31: #{_apply.1} parent=1 // pred_check_branch
      %59 = sbr.rel (0) target = $region33
    $region32: #{_apply.1} parent=1 // pred_region
      %60 = dma.done [#allocation3], 1024
    $region33: #{_apply.1} parent=1 // pred_fallthru
      _
    // Predicated region
    $region34: #{_apply.1} parent=1 // pred_check
      _
    $region35: #{_apply.1} parent=1 // pred_check_branch
      %62 = sbr.rel (0) target = $region37
    $region36: #{_apply.1} parent=1 // pred_region
      %63 = dma.done [#allocation5], 1024
    $region37: #{_apply.1} parent=1 // pred_fallthru
      _
    // Predicated region
    $region38: #{_apply.1} parent=1 // pred_check
      _
    $region39: #{_apply.1} parent=1 // pred_check_branch
      %65 = sbr.rel (0) target = $region41
    $region40: #{_apply.1} parent=1 // pred_region
      %66 = dma.done [#allocation5], 1024
    $region41: #{_apply.1} parent=1 // pred_fallthru
      _
    %v68 = vld [vmem:[%s0] sm:$0xf]
    %v69 = vld [vmem:[%s0 + $0x4] sm:$0xf]
    %v70 = vld [vmem:[#allocation2] sm:$0xf]
    %v71 = vld [vmem:[#allocation2 + $0x4] sm:$0xf]
    %v72 = vld [vmem:[#allocation2 + $0x8] sm:$0xf]
    %v73 = vld [vmem:[#allocation2 + $0xc] sm:$0xf]
    %v74 = vld [vmem:[#allocation2 + $0x10] sm:$0xf]
    %v75 = vld [vmem:[#allocation2 + $0x14] sm:$0xf]
    %v76 = vld [vmem:[#allocation2 + $0x18] sm:$0xf]
    %v77 = vld [vmem:[#allocation2 + $0x1c] sm:$0xf]
    %v78 = vld [vmem:[#allocation2 + $0x20] sm:$0xf]
    %v79 = vld [vmem:[#allocation2 + $0x24] sm:$0xf]
    %v80 = vld [vmem:[#allocation2 + $0x28] sm:$0xf]
    %v81 = vld [vmem:[#allocation2 + $0x2c] sm:$0xf]
    %v82 = vld [vmem:[#allocation2 + $0x30] sm:$0xf]
    %v83 = vld [vmem:[#allocation2 + $0x34] sm:$0xf]
    %v84 = vld [vmem:[#allocation2 + $0x38] sm:$0xf]
    %v85 = vld [vmem:[#allocation2 + $0x3c] sm:$0xf]
    %v86 = vld [vmem:[%s2] sm:$0x1]
    %v88 = vlaneseq
    %v89 = vshrl.u32 %v88, 7
    %v90 = vsub.s32 0, %v89
    %v91 = vrot.slane %v86, %v90
    %v95 = vunpack.c.l.b16 %v68
    %v96 = vunpack.c.l.b16 %v69
    %v97 = vpack.c.b16 %v96, %v95
    %v115 = vunpack.c.l.b16 %v70
    %v116 = vunpack.c.l.b16 %v71
    %v117 = vunpack.c.l.b16 %v72
    %v118 = vunpack.c.l.b16 %v73
    %v119 = vunpack.c.l.b16 %v74
    %v120 = vunpack.c.l.b16 %v75
    %v121 = vunpack.c.l.b16 %v76
    %v122 = vunpack.c.l.b16 %v77
    %v123 = vunpack.c.l.b16 %v78
    %v124 = vunpack.c.l.b16 %v79
    %v125 = vunpack.c.l.b16 %v80
    %v126 = vunpack.c.l.b16 %v81
    %v127 = vunpack.c.l.b16 %v82
    %v128 = vunpack.c.l.b16 %v83
    %v129 = vunpack.c.l.b16 %v84
    %v130 = vunpack.c.l.b16 %v85
    %v131 = vpack.c.b16 %v116, %v115
    %v132 = vpack.c.b16 %v118, %v117
    %v133 = vpack.c.b16 %v120, %v119
    %v134 = vpack.c.b16 %v122, %v121
    %v135 = vpack.c.b16 %v124, %v123
    %v136 = vpack.c.b16 %v126, %v125
    %v137 = vpack.c.b16 %v128, %v127
    %v138 = vpack.c.b16 %v130, %v129
    %147 = vmatprep.subr.bf16.mxu0 0
    %148 = vmatpush1.bf16.msra.mxu0 %v138
    %149 = vmatprep.subr.bf16.mxu0 0
    %150 = vmatpush1.bf16.msra.mxu0 %v137
    %151 = vmatprep.subr.bf16.mxu0 0
    %152 = vmatpush1.bf16.msra.mxu0 %v136
    %153 = vmatprep.subr.bf16.mxu0 0
    %154 = vmatpush1.bf16.msra.mxu0 %v135
    %155 = vmatprep.subr.bf16.mxu0 0
    %156 = vmatpush1.bf16.msra.mxu0 %v134
    %157 = vmatprep.subr.bf16.mxu0 0
    %158 = vmatpush1.bf16.msra.mxu0 %v133
    %159 = vmatprep.subr.bf16.mxu0 0
    %160 = vmatpush1.bf16.msra.mxu0 %v132
    %161 = vmatprep.subr.bf16.mxu0 0
    %162 = vmatpush1.bf16.msra.mxu0 %v131
    %163 = vmatprep.subr.bf16.mxu0 0
    %164 = vmatpush2.bf16.msra.mxu0 0
    %165 = vmatprep.subr.bf16.mxu0 0
    %166 = vmatpush2.bf16.msra.mxu0 0
    %167 = vmatprep.subr.bf16.mxu0 0
    %168 = vmatpush2.bf16.msra.mxu0 0
    %169 = vmatprep.subr.bf16.mxu0 0
    %170 = vmatpush2.bf16.msra.mxu0 0
    %171 = vmatprep.subr.bf16.mxu0 0
    %172 = vmatpush2.bf16.msra.mxu0 0
    %173 = vmatprep.subr.bf16.mxu0 0
    %174 = vmatpush2.bf16.msra.mxu0 0
    %175 = vmatprep.subr.bf16.mxu0 0
    %176 = vmatpush2.bf16.msra.mxu0 0
    %177 = vmatprep.subr.bf16.mxu0 0
    %178 = vmatpush2.bf16.msra.mxu0 0
    %179 = vmatprep.mubr.bf16.mxu0 0
    %180 = vmatmul.mubr.bf16.gmra.mxu0 %v97
    %v181 = vpop.f32.mrf.mxu0
    %v182 = vadd.f32 %v91, %v181
    %v183 = vpop.f32.mrf.mxu0
    %v184 = vpop.f32.mrf.mxu0
    %v185 = vadd.f32 %v91, %v184
    %v186 = vpop.f32.mrf.mxu0
    %187 = vdwg.mxu0
    %vm188 = vcmp.ge.f32.partialorder %v182, 0.0
    %vm189 = vcmp.ge.f32.partialorder %v185, 0.0
    %v190 = vmul.f32 %v182, 0.02
    %v191 = vmul.f32 %v185, 0.02
    %v192 = vsel %vm188, %v182, %v190
    %v193 = vsel %vm189, %v185, %v191
    %v194 = vpack.c.bf16 %v193, %v192
    %v195 = vld [vmem:[#allocation4] sm:$0xf]
    %v196 = vld [vmem:[#allocation4 + $0x4] sm:$0xf]
    %v197 = vld [vmem:[#allocation4 + $0x8] sm:$0xf]
    %v198 = vld [vmem:[#allocation4 + $0xc] sm:$0xf]
    %v199 = vld [vmem:[#allocation4 + $0x10] sm:$0xf]
    %v200 = vld [vmem:[#allocation4 + $0x14] sm:$0xf]
    %v201 = vld [vmem:[#allocation4 + $0x18] sm:$0xf]
    %v202 = vld [vmem:[#allocation4 + $0x1c] sm:$0xf]
    %v203 = vld [vmem:[#allocation4 + $0x20] sm:$0xf]
    %v204 = vld [vmem:[#allocation4 + $0x24] sm:$0xf]
    %v205 = vld [vmem:[#allocation4 + $0x28] sm:$0xf]
    %v206 = vld [vmem:[#allocation4 + $0x2c] sm:$0xf]
    %v207 = vld [vmem:[#allocation4 + $0x30] sm:$0xf]
    %v208 = vld [vmem:[#allocation4 + $0x34] sm:$0xf]
    %v209 = vld [vmem:[#allocation4 + $0x38] sm:$0xf]
    %v210 = vld [vmem:[#allocation4 + $0x3c] sm:$0xf]
    %v211 = vld [vmem:[%s4] sm:$0x1]
    %v213 = vlaneseq
    %v214 = vshrl.u32 %v213, 7
    %v215 = vsub.s32 0, %v214
    %v216 = vrot.slane %v211, %v215
    %v234 = vunpack.c.l.b16 %v195
    %v235 = vunpack.c.l.b16 %v196
    %v236 = vunpack.c.l.b16 %v197
    %v237 = vunpack.c.l.b16 %v198
    %v238 = vunpack.c.l.b16 %v199
    %v239 = vunpack.c.l.b16 %v200
    %v240 = vunpack.c.l.b16 %v201
    %v241 = vunpack.c.l.b16 %v202
    %v242 = vunpack.c.l.b16 %v203
    %v243 = vunpack.c.l.b16 %v204
    %v244 = vunpack.c.l.b16 %v205
    %v245 = vunpack.c.l.b16 %v206
    %v246 = vunpack.c.l.b16 %v207
    %v247 = vunpack.c.l.b16 %v208
    %v248 = vunpack.c.l.b16 %v209
    %v249 = vunpack.c.l.b16 %v210
    %v250 = vpack.c.b16 %v235, %v234
    %v251 = vpack.c.b16 %v237, %v236
    %v252 = vpack.c.b16 %v239, %v238
    %v253 = vpack.c.b16 %v241, %v240
    %v254 = vpack.c.b16 %v243, %v242
    %v255 = vpack.c.b16 %v245, %v244
    %v256 = vpack.c.b16 %v247, %v246
    %v257 = vpack.c.b16 %v249, %v248
    %266 = vmatprep.subr.bf16.mxu0 0
    %267 = vmatpush1.bf16.msra.mxu0 %v257
    %268 = vmatprep.subr.bf16.mxu0 0
    %269 = vmatpush1.bf16.msra.mxu0 %v256
    %270 = vmatprep.subr.bf16.mxu0 0
    %271 = vmatpush1.bf16.msra.mxu0 %v255
    %272 = vmatprep.subr.bf16.mxu0 0
    %273 = vmatpush1.bf16.msra.mxu0 %v254
    %274 = vmatprep.subr.bf16.mxu0 0
    %275 = vmatpush1.bf16.msra.mxu0 %v253
    %276 = vmatprep.subr.bf16.mxu0 0
    %277 = vmatpush1.bf16.msra.mxu0 %v252
    %278 = vmatprep.subr.bf16.mxu0 0
    %279 = vmatpush1.bf16.msra.mxu0 %v251
    %280 = vmatprep.subr.bf16.mxu0 0
    %281 = vmatpush1.bf16.msra.mxu0 %v250
    %282 = vmatprep.subr.bf16.mxu0 0
    %283 = vmatpush2.bf16.msra.mxu0 0
    %284 = vmatprep.subr.bf16.mxu0 0
    %285 = vmatpush2.bf16.msra.mxu0 0
    %286 = vmatprep.subr.bf16.mxu0 0
    %287 = vmatpush2.bf16.msra.mxu0 0
    %288 = vmatprep.subr.bf16.mxu0 0
    %289 = vmatpush2.bf16.msra.mxu0 0
    %290 = vmatprep.subr.bf16.mxu0 0
    %291 = vmatpush2.bf16.msra.mxu0 0
    %292 = vmatprep.subr.bf16.mxu0 0
    %293 = vmatpush2.bf16.msra.mxu0 0
    %294 = vmatprep.subr.bf16.mxu0 0
    %295 = vmatpush2.bf16.msra.mxu0 0
    %296 = vmatprep.subr.bf16.mxu0 0
    %297 = vmatpush2.bf16.msra.mxu0 0
    %298 = vmatprep.mubr.bf16.mxu0 0
    %299 = vmatmul.mubr.bf16.gmra.mxu0 %v194
    %v300 = vpop.f32.mrf.mxu0
    %v301 = vadd.f32 %v216, %v300
    %v302 = vpop.f32.mrf.mxu0
    %v303 = vpop.f32.mrf.mxu0
    %v304 = vadd.f32 %v216, %v303
    %v305 = vpop.f32.mrf.mxu0
    %306 = vdwg.mxu0
    %vm307 = vcmp.ge.f32.partialorder %v301, 0.0
    %vm308 = vcmp.ge.f32.partialorder %v304, 0.0
    %v309 = vmul.f32 %v301, 0.02
    %v310 = vmul.f32 %v304, 0.02
    %v311 = vsel %vm307, %v301, %v309
    %v312 = vsel %vm308, %v304, %v310
    %v313 = vpack.c.bf16 %v312, %v311
    %v314 = vld [vmem:[#allocation6] sm:$0xf]
    %v315 = vld [vmem:[#allocation6 + $0x4] sm:$0xf]
    %v316 = vld [vmem:[#allocation6 + $0x8] sm:$0xf]
    %v317 = vld [vmem:[#allocation6 + $0xc] sm:$0xf]
    %v318 = vld [vmem:[#allocation6 + $0x10] sm:$0xf]
    %v319 = vld [vmem:[#allocation6 + $0x14] sm:$0xf]
    %v320 = vld [vmem:[#allocation6 + $0x18] sm:$0xf]
    %v321 = vld [vmem:[#allocation6 + $0x1c] sm:$0xf]
    %v322 = vld [vmem:[#allocation6 + $0x20] sm:$0xf]
    %v323 = vld [vmem:[#allocation6 + $0x24] sm:$0xf]
    %v324 = vld [vmem:[#allocation6 + $0x28] sm:$0xf]
    %v325 = vld [vmem:[#allocation6 + $0x2c] sm:$0xf]
    %v326 = vld [vmem:[#allocation6 + $0x30] sm:$0xf]
    %v327 = vld [vmem:[#allocation6 + $0x34] sm:$0xf]
    %v328 = vld [vmem:[#allocation6 + $0x38] sm:$0xf]
    %v329 = vld [vmem:[#allocation6 + $0x3c] sm:$0xf]
    %v330 = vld [vmem:[%s6] sm:$0x1]
    %v332 = vlaneseq
    %v333 = vshrl.u32 %v332, 7
    %v334 = vsub.s32 0, %v333
    %v335 = vrot.slane %v330, %v334
    %v353 = vunpack.c.l.b16 %v314
    %v354 = vunpack.c.l.b16 %v315
    %v355 = vunpack.c.l.b16 %v316
    %v356 = vunpack.c.l.b16 %v317
    %v357 = vunpack.c.l.b16 %v318
    %v358 = vunpack.c.l.b16 %v319
    %v359 = vunpack.c.l.b16 %v320
    %v360 = vunpack.c.l.b16 %v321
    %v361 = vunpack.c.l.b16 %v322
    %v362 = vunpack.c.l.b16 %v323
    %v363 = vunpack.c.l.b16 %v324
    %v364 = vunpack.c.l.b16 %v325
    %v365 = vunpack.c.l.b16 %v326
    %v366 = vunpack.c.l.b16 %v327
    %v367 = vunpack.c.l.b16 %v328
    %v368 = vunpack.c.l.b16 %v329
    %v369 = vpack.c.b16 %v354, %v353
    %v370 = vpack.c.b16 %v356, %v355
    %v371 = vpack.c.b16 %v358, %v357
    %v372 = vpack.c.b16 %v360, %v359
    %v373 = vpack.c.b16 %v362, %v361
    %v374 = vpack.c.b16 %v364, %v363
    %v375 = vpack.c.b16 %v366, %v365
    %v376 = vpack.c.b16 %v368, %v367
    %385 = vmatprep.subr.bf16.mxu0 0
    %386 = vmatpush1.bf16.msra.mxu0 %v376
    %387 = vmatprep.subr.bf16.mxu0 0
    %388 = vmatpush1.bf16.msra.mxu0 %v375
    %389 = vmatprep.subr.bf16.mxu0 0
    %390 = vmatpush1.bf16.msra.mxu0 %v374
    %391 = vmatprep.subr.bf16.mxu0 0
    %392 = vmatpush1.bf16.msra.mxu0 %v373
    %393 = vmatprep.subr.bf16.mxu0 0
    %394 = vmatpush1.bf16.msra.mxu0 %v372
    %395 = vmatprep.subr.bf16.mxu0 0
    %396 = vmatpush1.bf16.msra.mxu0 %v371
    %397 = vmatprep.subr.bf16.mxu0 0
    %398 = vmatpush1.bf16.msra.mxu0 %v370
    %399 = vmatprep.subr.bf16.mxu0 0
    %400 = vmatpush1.bf16.msra.mxu0 %v369
    %401 = vmatprep.subr.bf16.mxu0 0
    %402 = vmatpush2.bf16.msra.mxu0 0
    %403 = vmatprep.subr.bf16.mxu0 0
    %404 = vmatpush2.bf16.msra.mxu0 0
    %405 = vmatprep.subr.bf16.mxu0 0
    %406 = vmatpush2.bf16.msra.mxu0 0
    %407 = vmatprep.subr.bf16.mxu0 0
    %408 = vmatpush2.bf16.msra.mxu0 0
    %409 = vmatprep.subr.bf16.mxu0 0
    %410 = vmatpush2.bf16.msra.mxu0 0
    %411 = vmatprep.subr.bf16.mxu0 0
    %412 = vmatpush2.bf16.msra.mxu0 0
    %413 = vmatprep.subr.bf16.mxu0 0
    %414 = vmatpush2.bf16.msra.mxu0 0
    %415 = vmatprep.subr.bf16.mxu0 0
    %416 = vmatpush2.bf16.msra.mxu0 0
    %417 = vmatprep.mubr.bf16.mxu0 0
    %418 = vmatmul.mubr.bf16.gmra.mxu0 %v313
    %v419 = vpop.f32.mrf.mxu0
    %v420 = vadd.f32 %v335, %v419
    %v421 = vpop.f32.mrf.mxu0
    %v422 = vpop.f32.mrf.mxu0
    %v423 = vadd.f32 %v335, %v422
    %v424 = vpop.f32.mrf.mxu0
    %425 = vdwg.mxu0
    %426 = vmax.xlane.f32.xlu0 %v420
    %v427 = vpop.xlane.xlu0 %426
    %428 = vmax.xlane.f32.xlu0 %v423
    %v429 = vpop.xlane.xlu0 %428
    %v430 = vsub.f32 %v420, %v427
    %v431 = vsub.f32 %v423, %v429
    %v432 = vmul.f32 %v430, 1.442695
    %v433 = vpow.pop %v432
    %v434 = vmul.f32 %v431, 1.442695
    %v435 = vpow.pop %v434
    %436 = vadd.xlane.f32.xlu0 %v433
    %v437 = vpop.xlane.xlu0 %436
    %438 = vadd.xlane.f32.xlu0 %v435
    %v439 = vpop.xlane.xlu0 %438
    %v440 = vlog2.pop %v437
    %v441 = vmul.f32 %v440, 0.6931472
    %v442 = vlog2.pop %v439
    %v443 = vmul.f32 %v442, 0.6931472
    %v444 = vsub.f32 %v430, %v441
    %v445 = vsub.f32 %v431, %v443
    %446 = vst [vmem:[%s7] sm:$0xff] %v444
    %447 = vst [vmem:[%s7 + $0x8] sm:$0xff] %v445
    // Predicated region
    $region42: #{_apply.1} parent=1 // pred_check
      _
    $region43: #{_apply.1} parent=1 // pred_check_branch
      %449 = sbr.rel (0) target = $region45
    $region44: #{_apply.1} parent=1 // pred_region
      _
    $region45: #{_apply.1} parent=1 // pred_fallthru
      _
    // Predicated region
    $region46: #{_apply.1} parent=1 // pred_check
      _
    $region47: #{_apply.1} parent=1 // pred_check_branch
      %451 = sbr.rel (0) target = $region49
    $region48: #{_apply.1} parent=1 // pred_region
      _
    $region49: #{_apply.1} parent=1 // pred_fallthru
      _
    %452 = vsyncpa [#allocation3], 1
    %453 = vsyncpa [#allocation5], 1

</llo_original>
